<compile_context>
chip_gen: v6e
topology: v6e:2x2x1
jax: 0.10.0
libtpu: 0.0.40
codegen_flags: <defaults>
</compile_context>

<pallas_src>
import numpy as np
import jax
import jax.numpy as jnp
from jax.experimental import pallas as pl
from jax.experimental.pallas import tpu as pltpu

# ----------------------------- configuration -------------------------------
N_FFT = 256
WIN_SIZE = 256
HOP_SIZE = 64
N_MELS = 32
SAMPLE_RATE = 16000
FMIN = 0.0
FMAX = 8000.0
BATCH = 2
T_SAMPLES = 1024

N_BINS = 128                 # onesided bins kept; Nyquist bin dropped (zero mel weight
                             # because fmax == sr/2 -> Slaney triangle hits 0 there)
N_MELS_PAD = 128             # lane-dense mel output (sliced back to 32 outside)
M_TILE_MAX = 512             # frames-per-grid-step (multiple of 128 and 256)


# --------------------- librosa_mel_fn (Slaney, norm='slaney') ---------------
def librosa_mel_fn(sr, n_fft, n_mels, fmin, fmax):
    def hz_to_mel(f):
        f = np.asarray(f, dtype=np.float64)
        f_sp = 200.0 / 3.0
        mels = f / f_sp
        min_log_hz = 1000.0
        min_log_mel = min_log_hz / f_sp
        logstep = np.log(6.4) / 27.0
        return np.where(f >= min_log_hz,
                        min_log_mel + np.log(np.maximum(f, 1e-12) / min_log_hz) / logstep,
                        mels)

    def mel_to_hz(m):
        m = np.asarray(m, dtype=np.float64)
        f_sp = 200.0 / 3.0
        freqs = f_sp * m
        min_log_hz = 1000.0
        min_log_mel = min_log_hz / f_sp
        logstep = np.log(6.4) / 27.0
        return np.where(m >= min_log_mel,
                        min_log_hz * np.exp(logstep * (m - min_log_mel)),
                        freqs)

    if fmax is None:
        fmax = sr / 2.0
    n_freq = n_fft // 2 + 1
    fftfreqs = np.linspace(0.0, sr / 2.0, n_freq)
    mel_pts = np.linspace(hz_to_mel(fmin), hz_to_mel(fmax), n_mels + 2)
    mel_f = mel_to_hz(mel_pts)
    fdiff = np.diff(mel_f)
    ramps = mel_f[:, None] - fftfreqs[None, :]
    weights = np.zeros((n_mels, n_freq), dtype=np.float64)
    for i in range(n_mels):
        lower = -ramps[i] / fdiff[i]
        upper = ramps[i + 2] / fdiff[i + 1]
        weights[i] = np.maximum(0.0, np.minimum(lower, upper))
    enorm = 2.0 / (mel_f[2:n_mels + 2] - mel_f[:n_mels])   # slaney norm
    weights *= enorm[:, None]
    return weights.astype(np.float32)


# ------------------------------- parameters ---------------------------------
def build_params():
    # periodic Hann window (torch.hann_window default periodic=True)
    n = np.arange(WIN_SIZE, dtype=np.float64)
    hann = 0.5 * (1.0 - np.cos(2.0 * np.pi * n / WIN_SIZE))
    # torch.stft centers a shorter window inside n_fft (no-op here: win == n_fft)
    window = np.zeros(N_FFT, dtype=np.float64)
    left = (N_FFT - WIN_SIZE) // 2
    window[left:left + WIN_SIZE] = hann

    # real/imag DFT bases with the window folded in:
    # (x*w) @ C == x @ (diag(w) C), so the kernel never multiplies by w.
    # Only the first N_BINS=128 onesided bins are kept (Nyquist has zero mel weight).
    nn = np.arange(N_FFT, dtype=np.float64)[:, None]
    ff = np.arange(N_BINS, dtype=np.float64)[None, :]
    ang = 2.0 * np.pi * nn * ff / N_FFT
    basis = np.concatenate(
        [np.cos(ang) * window[:, None],            # cols   0..127 : real
         np.sin(ang) * window[:, None]],           # cols 128..255 : imag (sign irrelevant)
        axis=1).astype(np.float32)                 # (N_FFT, 2*N_BINS) = (256, 256)

    mel_basis = librosa_mel_fn(SAMPLE_RATE, N_FFT, N_MELS, FMIN, FMAX)  # (32, 129)
    mel_T = np.zeros((N_BINS, N_MELS_PAD), dtype=np.float32)
    mel_T[:, :N_MELS] = mel_basis[:, :N_BINS].T    # padded mel columns stay zero

    return window.astype(np.float32), basis, mel_basis, mel_T


# ------------------------------ Pallas kernel --------------------------------
def _mel_kernel(frames_ref, basis_ref, melT_ref, out_ref):
    # frames_ref: (m_tile, 256) bf16   basis_ref: (256, 256) bf16
    # melT_ref:   (128, 128)   bf16    out_ref:   (m_tile, 128) f32
    proj = jnp.dot(frames_ref[...], basis_ref[...],
                   preferred_element_type=jnp.float32)          # one bf16 MXU pass
    re = proj[:, :N_BINS]                                        # 128-aligned slices
    im = proj[:, N_BINS:]
    mag = jnp.sqrt(re * re + im * im + 1e-9)                     # |STFT| + eps (f32)
    mel = jnp.dot(mag.astype(jnp.bfloat16), melT_ref[...],
                  preferred_element_type=jnp.float32)
    out_ref[...] = jnp.log(jnp.maximum(mel, 1e-5))               # lane-dense store


def _round_up(x, m):
    return ((x + m - 1) // m) * m


def mel_spectrogram(y, basis_bf16, mel_T_bf16):
    # glue: reflect pad + framing (pure data movement), then the Pallas hot path
    b = y.shape[0]
    pad = (N_FFT - HOP_SIZE) // 2
    y_pad = jnp.pad(y, ((0, 0), (pad, pad)), mode="reflect")
    total = y_pad.shape[1]
    n_frames = 1 + (total - N_FFT) // HOP_SIZE
    ratio = N_FFT // HOP_SIZE                                    # = 4

    # Frame via hop-chunks + shifted slices (no XLA gather): frame t is the
    # concatenation of hop chunks t..t+3.
    n_chunks = -(-total // HOP_SIZE)
    y_pad = jnp.pad(y_pad, ((0, 0), (0, n_chunks * HOP_SIZE - total)))
    chunks = y_pad.reshape(b, n_chunks, HOP_SIZE)
    frames = jnp.concatenate(
        [chunks[:, k:k + n_frames, :] for k in range(ratio)], axis=-1)   # (B, nF, 256)
    # TODO(synk): for long audio, build frames inside the kernel from the raw
    # hop chunks (manual DMA of each tile's audio span) to cut the 4x frame
    # HBM traffic; negligible at this size.

    # flatten batch*frames into the matmul M dimension, tile it for the grid
    m = b * n_frames
    m_tile = min(M_TILE_MAX, _round_up(m, 8))
    m_pad = _round_up(m, m_tile)
    frames2d = frames.reshape(m, N_FFT).astype(jnp.bfloat16)
    if m_pad != m:
        frames2d = jnp.pad(frames2d, ((0, m_pad - m), (0, 0)))

    out = pl.pallas_call(
        _mel_kernel,
        out_shape=jax.ShapeDtypeStruct((m_pad, N_MELS_PAD), jnp.float32),
        grid=(m_pad // m_tile,),
        in_specs=[
            pl.BlockSpec((m_tile, N_FFT), lambda i: (i, 0)),         # streamed frames
            pl.BlockSpec((N_FFT, 2 * N_BINS), lambda i: (0, 0)),     # constant basis
            pl.BlockSpec((N_BINS, N_MELS_PAD), lambda i: (0, 0)),    # constant mel_T
        ],
        out_specs=pl.BlockSpec((m_tile, N_MELS_PAD), lambda i: (i, 0)),
        compiler_params=pltpu.CompilerParams(dimension_semantics=("parallel",)),
    )(frames2d, basis_bf16, mel_T_bf16)

    # slice away padded mels / rows, restore torch layout (B, N_MELS, n_frames)
    mel = out[:m, :N_MELS].reshape(b, n_frames, N_MELS)
    return jnp.transpose(mel, (0, 2, 1))


# ------------------------------- reference -----------------------------------
def ref_mel(y_np, window_np, mel_basis_np):
    pad = (N_FFT - HOP_SIZE) // 2
    y_pad = np.pad(y_np, ((0, 0), (pad, pad)), mode="reflect")
    n_frames = 1 + (y_pad.shape[1] - N_FFT) // HOP_SIZE
    idx = np.arange(n_frames)[:, None] * HOP_SIZE + np.arange(N_FFT)[None, :]
    frames = y_pad[:, idx] * window_np[None, None, :]
    spec = np.fft.rfft(frames, n=N_FFT, axis=-1)             # (B, n_frames, 129)
    mag = np.sqrt(np.abs(spec) ** 2 + 1e-9)
    mel = np.einsum("mf,bnf->bmn", mel_basis_np, mag)        # (B, N_MELS, n_frames)
    return np.log(np.clip(mel, 1e-5, None))


# --------------------------------- main ---------------------------------------
if __name__ == "__main__":
    window, basis, mel_basis, mel_T = build_params()

    key = jax.random.PRNGKey(0)
    y = jax.random.normal(key, (BATCH, T_SAMPLES), dtype=jnp.float32)

    basis_bf = jnp.asarray(basis).astype(jnp.bfloat16)
    mel_T_bf = jnp.asarray(mel_T).astype(jnp.bfloat16)

    mel_fn = jax.jit(mel_spectrogram)
    out = mel_fn(y, basis_bf, mel_T_bf)
    out = jax.block_until_ready(out)

    ref = ref_mel(np.asarray(y), window, mel_basis)
    assert out.shape == ref.shape, (out.shape, ref.shape)
    np.testing.assert_allclose(np.asarray(out), ref, rtol=2e-2, atol=2e-2)

    print("KERNEL_OK")
</pallas_src>

<mosaic_0001>
module attributes {stable_mosaic.version = 11 : i64} {
  func.func @_mel_kernel(%arg0: i32, %arg1: memref<32x256xbf16, #tpu.memory_space<vmem>>, %arg2: memref<256x256xbf16, #tpu.memory_space<vmem>>, %arg3: memref<128x128xbf16, #tpu.memory_space<vmem>>, %arg4: memref<32x128xf32, #tpu.memory_space<vmem>>) attributes {dimension_semantics = [#tpu.dimension_semantics<parallel>], iteration_bounds = array<i64: 1>, scalar_prefetch = 0 : i64, scratch_operands = 0 : i64, tpu.core_type = #tpu.core_type<tc>, window_params = [{transform_indices = @transform_0, window_bounds = array<i64: 32, 256>}, {pipeline_mode = #tpu.pipeline_mode<synchronous>, transform_indices = @transform_1, window_bounds = array<i64: 256, 256>}, {pipeline_mode = #tpu.pipeline_mode<synchronous>, transform_indices = @transform_2, window_bounds = array<i64: 128, 128>}, {transform_indices = @transform_3, window_bounds = array<i64: 32, 128>}]} {
    %c0 = arith.constant 0 : index
    %c0_0 = arith.constant 0 : index
    %0 = vector.load %arg1[%c0, %c0_0] : memref<32x256xbf16, #tpu.memory_space<vmem>>, vector<32x256xbf16>
    %c0_1 = arith.constant 0 : index
    %c0_2 = arith.constant 0 : index
    %1 = vector.load %arg2[%c0_1, %c0_2] : memref<256x256xbf16, #tpu.memory_space<vmem>>, vector<256x256xbf16>
    %cst = arith.constant dense<0.000000e+00> : vector<32x256xf32>
    %2 = tpu.matmul %0, %1, %cst {dimension_numbers = #tpu.dot_dimension_numbers<[1], [0], [0], [1], [0, 0, 1, 1], [], []>} : vector<32x256xbf16>, vector<256x256xbf16>, vector<32x256xf32> -> vector<32x256xf32>
    %3 = vector.extract_strided_slice %2 {offsets = [0, 0], sizes = [32, 128], strides = [1, 1]} : vector<32x256xf32> to vector<32x128xf32>
    %4 = vector.extract_strided_slice %2 {offsets = [0, 128], sizes = [32, 128], strides = [1, 1]} : vector<32x256xf32> to vector<32x128xf32>
    %5 = arith.mulf %3, %3 : vector<32x128xf32>
    %6 = arith.mulf %4, %4 : vector<32x128xf32>
    %7 = arith.addf %5, %6 : vector<32x128xf32>
    %cst_3 = arith.constant 9.99999971E-10 : f32
    %8 = vector.broadcast %cst_3 : f32 to vector<32x128xf32>
    %9 = arith.addf %7, %8 : vector<32x128xf32>
    %10 = math.sqrt %9 : vector<32x128xf32>
    %11 = arith.truncf %10 : vector<32x128xf32> to vector<32x128xbf16>
    %c0_4 = arith.constant 0 : index
    %c0_5 = arith.constant 0 : index
    %12 = vector.load %arg3[%c0_4, %c0_5] : memref<128x128xbf16, #tpu.memory_space<vmem>>, vector<128x128xbf16>
    %cst_6 = arith.constant dense<0.000000e+00> : vector<32x128xf32>
    %13 = tpu.matmul %11, %12, %cst_6 {dimension_numbers = #tpu.dot_dimension_numbers<[1], [0], [0], [1], [0, 0, 1, 1], [], []>} : vector<32x128xbf16>, vector<128x128xbf16>, vector<32x128xf32> -> vector<32x128xf32>
    %cst_7 = arith.constant 9.99999974E-6 : f32
    %14 = vector.broadcast %cst_7 : f32 to vector<32x128xf32>
    %15 = arith.maximumf %13, %14 : vector<32x128xf32>
    %16 = math.log %15 : vector<32x128xf32>
    %c0_8 = arith.constant 0 : index
    %c0_9 = arith.constant 0 : index
    %17 = vector.load %arg4[%c0_8, %c0_9] : memref<32x128xf32, #tpu.memory_space<vmem>>, vector<32x128xf32>
    tpu.vector_store %arg4[%c0_8, %c0_9], %16 {strides = array<i32>} : memref<32x128xf32, #tpu.memory_space<vmem>>, vector<32x128xf32>,
    return
  }
  func.func @transform_0(%arg0: i32) -> (i32, i32) {
    %c0_i32 = arith.constant 0 : i32
    %c0_i32_0 = arith.constant 0 : i32
    return %arg0, %c0_i32 : i32, i32
  }
  func.func @transform_1(%arg0: i32) -> (i32, i32) {
    %c0_i32 = arith.constant 0 : i32
    %c0_i32_0 = arith.constant 0 : i32
    %c0_i32_1 = arith.constant 0 : i32
    return %c0_i32, %c0_i32_0 : i32, i32
  }
  func.func @transform_2(%arg0: i32) -> (i32, i32) {
    %c0_i32 = arith.constant 0 : i32
    %c0_i32_0 = arith.constant 0 : i32
    %c0_i32_1 = arith.constant 0 : i32
    return %c0_i32, %c0_i32_0 : i32, i32
  }
  func.func @transform_3(%arg0: i32) -> (i32, i32) {
    %c0_i32 = arith.constant 0 : i32
    %c0_i32_0 = arith.constant 0 : i32
    return %arg0, %c0_i32 : i32, i32
  }
}

</mosaic_0001>

<llo_original>
// kernel: mel_spectrogram.1
$region0: #{mel_spectrogram.1}
  #allocation0 [shape = 'u32[]', space=smem, size = 0x4, offset = 0x4, fixed_abs, tag = 'smem constant byte address 0x4 - core index']
  #allocation1 [shape = 'u32[144,128]{1,0:T(1,128)}', space=vmem, size = 0x12000, scoped, tag = 'internal scratch']
  %s0 = inlined_call_operand.vmem [shape: bf16[32,256], index: 0, kind: input, shape index: {}]
  %s1 = inlined_call_operand.vmem [shape: bf16[256,256], index: 1, kind: input, shape index: {}]
  %s2 = inlined_call_operand.hbm [shape: bf16[128,128], index: 2, kind: input, shape index: {}]
  %s3 = inlined_call_operand.hbm [shape: f32[32,128], index: 3, kind: output, shape index: {}]
  %s4 = sld [smem:[#allocation0]]
  $region26: #{mel_spectrogram.1} parent=0
    _
  %s6 = ssub.s32 1, %s4
  %s7 = scalar_select 0, %s6, %s4
  $region1: #{mel_spectrogram.1} parent=0
    #allocation2 [shape = 'u8[32768]{0}', space=vmem, size = 0x8000, scoped, tag = 'input window, operand 2, single buffered']
    #allocation3 [shape = 's32[1]{0}', space=sflag, size = 0x4, scoped, tag = 'scoped memory for mel_spectrogram.1']
    #allocation4 [shape = 's32[1]{0}', space=sflag, size = 0x4, scoped, tag = 'scoped memory for mel_spectrogram.1']
    #allocation5 [shape = 'u8[16384]{0}', space=vmem, size = 0x4000, scoped, tag = 'output window, operand 0, single buffered']
    %8 = vsyncpa [#allocation3], 0
    %9 = vsyncpa [#allocation4], 0
    // Predicated region
    $region2: #{mel_spectrogram.1} parent=1 // pred_check
      _
    $region3: #{mel_spectrogram.1} parent=1 // pred_check_branch
      %11 = sbr.rel (0) target = $region5
    $region4: #{mel_spectrogram.1} parent=1 // pred_region
      _
    $region5: #{mel_spectrogram.1} parent=1 // pred_fallthru
      _
    // Predicated region
    $region6: #{mel_spectrogram.1} parent=1 // pred_check
      _
    $region7: #{mel_spectrogram.1} parent=1 // pred_check_branch
      %13 = sbr.rel (0) target = $region9
    $region8: #{mel_spectrogram.1} parent=1 // pred_region
      _
    $region9: #{mel_spectrogram.1} parent=1 // pred_fallthru
      _
    // Predicated region
    $region10: #{mel_spectrogram.1} parent=1 // pred_check
      _
    $region11: #{mel_spectrogram.1} parent=1 // pred_check_branch
      %15 = sbr.rel (0) target = $region13
    $region12: #{mel_spectrogram.1} parent=1 // pred_region
      %s17 = ssub.s32 1024, 1024
      %18 = vsyncadd [#allocation3], %s17
      %s19 = sshll.u32 [#allocation2], 4
      %s20 = int_to_ptr.vmem [resolvable:$true] %s19
      %25 = dma.hbm_to_vmem [thread:$0]  %s2, 1024, %s20, [#allocation3], 64, 64, 4
    $region13: #{mel_spectrogram.1} parent=1 // pred_fallthru
      _
    // Predicated region
    $region14: #{mel_spectrogram.1} parent=1 // pred_check
      _
    $region15: #{mel_spectrogram.1} parent=1 // pred_check_branch
      %27 = sbr.rel (0) target = $region17
    $region16: #{mel_spectrogram.1} parent=1 // pred_region
      %28 = dma.done [#allocation3], 1024
    $region17: #{mel_spectrogram.1} parent=1 // pred_fallthru
      _
    %v30 = vld [vmem:[%s0] sm:$0xff]
    %v31 = vld [vmem:[%s0 + $0x8] sm:$0xff]
    %v32 = vld [vmem:[%s0 + $0x10] sm:$0xff]
    %v33 = vld [vmem:[%s0 + $0x18] sm:$0xff]
    %v34 = vld [vmem:[%s1] sm:$0xff]
    %v35 = vld [vmem:[%s1 + $0x8] sm:$0xff]
    %v36 = vld [vmem:[%s1 + $0x10] sm:$0xff]
    %v37 = vld [vmem:[%s1 + $0x18] sm:$0xff]
    %v38 = vld [vmem:[%s1 + $0x20] sm:$0xff]
    %v39 = vld [vmem:[%s1 + $0x28] sm:$0xff]
    %v40 = vld [vmem:[%s1 + $0x30] sm:$0xff]
    %v41 = vld [vmem:[%s1 + $0x38] sm:$0xff]
    %v42 = vld [vmem:[%s1 + $0x40] sm:$0xff]
    %v43 = vld [vmem:[%s1 + $0x48] sm:$0xff]
    %v44 = vld [vmem:[%s1 + $0x50] sm:$0xff]
    %v45 = vld [vmem:[%s1 + $0x58] sm:$0xff]
    %v46 = vld [vmem:[%s1 + $0x60] sm:$0xff]
    %v47 = vld [vmem:[%s1 + $0x68] sm:$0xff]
    %v48 = vld [vmem:[%s1 + $0x70] sm:$0xff]
    %v49 = vld [vmem:[%s1 + $0x78] sm:$0xff]
    %v50 = vld [vmem:[%s1 + $0x80] sm:$0xff]
    %v51 = vld [vmem:[%s1 + $0x88] sm:$0xff]
    %v52 = vld [vmem:[%s1 + $0x90] sm:$0xff]
    %v53 = vld [vmem:[%s1 + $0x98] sm:$0xff]
    %v54 = vld [vmem:[%s1 + $0xa0] sm:$0xff]
    %v55 = vld [vmem:[%s1 + $0xa8] sm:$0xff]
    %v56 = vld [vmem:[%s1 + $0xb0] sm:$0xff]
    %v57 = vld [vmem:[%s1 + $0xb8] sm:$0xff]
    %v58 = vld [vmem:[%s1 + $0xc0] sm:$0xff]
    %v59 = vld [vmem:[%s1 + $0xc8] sm:$0xff]
    %v60 = vld [vmem:[%s1 + $0xd0] sm:$0xff]
    %v61 = vld [vmem:[%s1 + $0xd8] sm:$0xff]
    %v62 = vld [vmem:[%s1 + $0xe0] sm:$0xff]
    %v63 = vld [vmem:[%s1 + $0xe8] sm:$0xff]
    %v64 = vld [vmem:[%s1 + $0xf0] sm:$0xff]
    %v65 = vld [vmem:[%s1 + $0xf8] sm:$0xff]
    %v70 = vunpack.c.l.b16 %v30
    %v71 = vunpack.c.h.b16 %v30
    %v72 = vunpack.c.l.b16 %v31
    %v73 = vunpack.c.h.b16 %v31
    %v74 = vunpack.c.l.b16 %v32
    %v75 = vunpack.c.h.b16 %v32
    %v76 = vunpack.c.l.b16 %v33
    %v77 = vunpack.c.h.b16 %v33
    %v78 = vpack.c.b16 %v72, %v70
    %v79 = vpack.c.b16 %v73, %v71
    %v80 = vpack.c.b16 %v76, %v74
    %v81 = vpack.c.b16 %v77, %v75
    %v118 = vunpack.c.l.b16 %v34
    %v119 = vunpack.c.h.b16 %v34
    %v120 = vunpack.c.l.b16 %v35
    %v121 = vunpack.c.h.b16 %v35
    %v122 = vunpack.c.l.b16 %v36
    %v123 = vunpack.c.h.b16 %v36
    %v124 = vunpack.c.l.b16 %v37
    %v125 = vunpack.c.h.b16 %v37
    %v126 = vunpack.c.l.b16 %v38
    %v127 = vunpack.c.h.b16 %v38
    %v128 = vunpack.c.l.b16 %v39
    %v129 = vunpack.c.h.b16 %v39
    %v130 = vunpack.c.l.b16 %v40
    %v131 = vunpack.c.h.b16 %v40
    %v132 = vunpack.c.l.b16 %v41
    %v133 = vunpack.c.h.b16 %v41
    %v134 = vunpack.c.l.b16 %v42
    %v135 = vunpack.c.h.b16 %v42
    %v136 = vunpack.c.l.b16 %v43
    %v137 = vunpack.c.h.b16 %v43
    %v138 = vunpack.c.l.b16 %v44
    %v139 = vunpack.c.h.b16 %v44
    %v140 = vunpack.c.l.b16 %v45
    %v141 = vunpack.c.h.b16 %v45
    %v142 = vunpack.c.l.b16 %v46
    %v143 = vunpack.c.h.b16 %v46
    %v144 = vunpack.c.l.b16 %v47
    %v145 = vunpack.c.h.b16 %v47
    %v146 = vunpack.c.l.b16 %v48
    %v147 = vunpack.c.h.b16 %v48
    %v148 = vunpack.c.l.b16 %v49
    %v149 = vunpack.c.h.b16 %v49
    %v150 = vunpack.c.l.b16 %v50
    %v151 = vunpack.c.h.b16 %v50
    %v152 = vunpack.c.l.b16 %v51
    %v153 = vunpack.c.h.b16 %v51
    %v154 = vunpack.c.l.b16 %v52
    %v155 = vunpack.c.h.b16 %v52
    %v156 = vunpack.c.l.b16 %v53
    %v157 = vunpack.c.h.b16 %v53
    %v158 = vunpack.c.l.b16 %v54
    %v159 = vunpack.c.h.b16 %v54
    %v160 = vunpack.c.l.b16 %v55
    %v161 = vunpack.c.h.b16 %v55
    %v162 = vunpack.c.l.b16 %v56
    %v163 = vunpack.c.h.b16 %v56
    %v164 = vunpack.c.l.b16 %v57
    %v165 = vunpack.c.h.b16 %v57
    %v166 = vunpack.c.l.b16 %v58
    %v167 = vunpack.c.h.b16 %v58
    %v168 = vunpack.c.l.b16 %v59
    %v169 = vunpack.c.h.b16 %v59
    %v170 = vunpack.c.l.b16 %v60
    %v171 = vunpack.c.h.b16 %v60
    %v172 = vunpack.c.l.b16 %v61
    %v173 = vunpack.c.h.b16 %v61
    %v174 = vunpack.c.l.b16 %v62
    %v175 = vunpack.c.h.b16 %v62
    %v176 = vunpack.c.l.b16 %v63
    %v177 = vunpack.c.h.b16 %v63
    %v178 = vunpack.c.l.b16 %v64
    %v179 = vunpack.c.h.b16 %v64
    %v180 = vunpack.c.l.b16 %v65
    %v181 = vunpack.c.h.b16 %v65
    %v182 = vpack.c.b16 %v120, %v118
    %v183 = vpack.c.b16 %v121, %v119
    %v184 = vpack.c.b16 %v124, %v122
    %v185 = vpack.c.b16 %v125, %v123
    %v186 = vpack.c.b16 %v128, %v126
    %v187 = vpack.c.b16 %v129, %v127
    %v188 = vpack.c.b16 %v132, %v130
    %v189 = vpack.c.b16 %v133, %v131
    %v190 = vpack.c.b16 %v136, %v134
    %v191 = vpack.c.b16 %v137, %v135
    %v192 = vpack.c.b16 %v140, %v138
    %v193 = vpack.c.b16 %v141, %v139
    %v194 = vpack.c.b16 %v144, %v142
    %v195 = vpack.c.b16 %v145, %v143
    %v196 = vpack.c.b16 %v148, %v146
    %v197 = vpack.c.b16 %v149, %v147
    %v198 = vpack.c.b16 %v152, %v150
    %v199 = vpack.c.b16 %v153, %v151
    %v200 = vpack.c.b16 %v156, %v154
    %v201 = vpack.c.b16 %v157, %v155
    %v202 = vpack.c.b16 %v160, %v158
    %v203 = vpack.c.b16 %v161, %v159
    %v204 = vpack.c.b16 %v164, %v162
    %v205 = vpack.c.b16 %v165, %v163
    %v206 = vpack.c.b16 %v168, %v166
    %v207 = vpack.c.b16 %v169, %v167
    %v208 = vpack.c.b16 %v172, %v170
    %v209 = vpack.c.b16 %v173, %v171
    %v210 = vpack.c.b16 %v176, %v174
    %v211 = vpack.c.b16 %v177, %v175
    %v212 = vpack.c.b16 %v180, %v178
    %v213 = vpack.c.b16 %v181, %v179
    %246 = vmatprep.subr.bf16.mxu0 %v197
    %247 = vmatpush1.bf16.msra.mxu0 %v196
    %248 = vmatprep.subr.bf16.mxu0 %v195
    %249 = vmatpush1.bf16.msra.mxu0 %v194
    %250 = vmatprep.subr.bf16.mxu0 %v193
    %251 = vmatpush1.bf16.msra.mxu0 %v192
    %252 = vmatprep.subr.bf16.mxu0 %v191
    %253 = vmatpush1.bf16.msra.mxu0 %v190
    %254 = vmatprep.subr.bf16.mxu0 %v189
    %255 = vmatpush1.bf16.msra.mxu0 %v188
    %256 = vmatprep.subr.bf16.mxu0 %v187
    %257 = vmatpush1.bf16.msra.mxu0 %v186
    %258 = vmatprep.subr.bf16.mxu0 %v185
    %259 = vmatpush1.bf16.msra.mxu0 %v184
    %260 = vmatprep.subr.bf16.mxu0 %v183
    %261 = vmatpush1.bf16.msra.mxu0 %v182
    %262 = vmatprep.subr.bf16.mxu0 %v213
    %263 = vmatpush2.bf16.msra.mxu0 %v212
    %264 = vmatprep.subr.bf16.mxu0 %v211
    %265 = vmatpush2.bf16.msra.mxu0 %v210
    %266 = vmatprep.subr.bf16.mxu0 %v209
    %267 = vmatpush2.bf16.msra.mxu0 %v208
    %268 = vmatprep.subr.bf16.mxu0 %v207
    %269 = vmatpush2.bf16.msra.mxu0 %v206
    %270 = vmatprep.subr.bf16.mxu0 %v205
    %271 = vmatpush2.bf16.msra.mxu0 %v204
    %272 = vmatprep.subr.bf16.mxu0 %v203
    %273 = vmatpush2.bf16.msra.mxu0 %v202
    %274 = vmatprep.subr.bf16.mxu0 %v201
    %275 = vmatpush2.bf16.msra.mxu0 %v200
    %276 = vmatprep.subr.bf16.mxu0 %v199
    %277 = vmatpush2.bf16.msra.mxu0 %v198
    %278 = vmatprep.mubr.bf16.mxu0 %v79
    %279 = vmatmul.mubr.bf16.gmra.mxu0 %v78
    %v280 = vpop.f32.mrf.mxu0
    %v281 = vadd.f32 0.0, %v280
    %v282 = vpop.f32.mrf.mxu0
    %v283 = vadd.f32 0.0, %v282
    %v284 = vpop.f32.mrf.mxu0
    %v285 = vadd.f32 0.0, %v284
    %v286 = vpop.f32.mrf.mxu0
    %v287 = vadd.f32 0.0, %v286
    %288 = vmatprep.mubr.bf16.mxu0 %v81
    %289 = vmatmul.mubr.bf16.gmra.mxu0 %v80
    %v290 = vpop.f32.mrf.mxu0
    %v291 = vadd.f32 0.0, %v290
    %v292 = vpop.f32.mrf.mxu0
    %v293 = vadd.f32 0.0, %v292
    %v294 = vpop.f32.mrf.mxu0
    %v295 = vadd.f32 0.0, %v294
    %v296 = vpop.f32.mrf.mxu0
    %v297 = vadd.f32 0.0, %v296
    %298 = vdwg.mxu0
    %v299 = vmul.f32 %v281, %v281
    %v300 = vmul.f32 %v285, %v285
    %v301 = vmul.f32 %v291, %v291
    %v302 = vmul.f32 %v295, %v295
    %v303 = vmul.f32 %v283, %v283
    %v304 = vmul.f32 %v287, %v287
    %v305 = vmul.f32 %v293, %v293
    %v306 = vmul.f32 %v297, %v297
    %v307 = vadd.f32 %v299, %v303
    %v308 = vadd.f32 %v300, %v304
    %v309 = vadd.f32 %v301, %v305
    %v310 = vadd.f32 %v302, %v306
    %v311 = vadd.f32 %v307, 1e-09
    %v312 = vadd.f32 %v308, 1e-09
    %v313 = vadd.f32 %v309, 1e-09
    %v314 = vadd.f32 %v310, 1e-09
    %v315 = vrsqrt.pop %v311
    %v316 = vmul.f32 %v311, %v315
    %vm317 = vcmp.eq.f32.partialorder %v311, inf
    %v318 = vsel %vm317, %v311, %v316
    %vm319 = vcmp.eq.f32.partialorder %v311, 0.0
    %v320 = vand.u32 %v311, 2147483648
    %v321 = vsel %vm319, %v320, %v318
    %v322 = vrsqrt.pop %v312
    %v323 = vmul.f32 %v312, %v322
    %vm324 = vcmp.eq.f32.partialorder %v312, inf
    %v325 = vsel %vm324, %v312, %v323
    %vm326 = vcmp.eq.f32.partialorder %v312, 0.0
    %v327 = vand.u32 %v312, 2147483648
    %v328 = vsel %vm326, %v327, %v325
    %v329 = vrsqrt.pop %v313
    %v330 = vmul.f32 %v313, %v329
    %vm331 = vcmp.eq.f32.partialorder %v313, inf
    %v332 = vsel %vm331, %v313, %v330
    %vm333 = vcmp.eq.f32.partialorder %v313, 0.0
    %v334 = vand.u32 %v313, 2147483648
    %v335 = vsel %vm333, %v334, %v332
    %v336 = vrsqrt.pop %v314
    %v337 = vmul.f32 %v314, %v336
    %vm338 = vcmp.eq.f32.partialorder %v314, inf
    %v339 = vsel %vm338, %v314, %v337
    %vm340 = vcmp.eq.f32.partialorder %v314, 0.0
    %v341 = vand.u32 %v314, 2147483648
    %v342 = vsel %vm340, %v341, %v339
    %v343 = vpack.c.bf16 %v328, %v321
    %v344 = vpack.c.bf16 %v342, %v335
    %v345 = vld [vmem:[#allocation2] sm:$0xf]
    %v346 = vld [vmem:[#allocation2 + $0x4] sm:$0xf]
    %v347 = vld [vmem:[#allocation2 + $0x8] sm:$0xf]
    %v348 = vld [vmem:[#allocation2 + $0xc] sm:$0xf]
    %v349 = vld [vmem:[#allocation2 + $0x10] sm:$0xf]
    %v350 = vld [vmem:[#allocation2 + $0x14] sm:$0xf]
    %v351 = vld [vmem:[#allocation2 + $0x18] sm:$0xf]
    %v352 = vld [vmem:[#allocation2 + $0x1c] sm:$0xf]
    %v353 = vld [vmem:[#allocation2 + $0x20] sm:$0xf]
    %v354 = vld [vmem:[#allocation2 + $0x24] sm:$0xf]
    %v355 = vld [vmem:[#allocation2 + $0x28] sm:$0xf]
    %v356 = vld [vmem:[#allocation2 + $0x2c] sm:$0xf]
    %v357 = vld [vmem:[#allocation2 + $0x30] sm:$0xf]
    %v358 = vld [vmem:[#allocation2 + $0x34] sm:$0xf]
    %v359 = vld [vmem:[#allocation2 + $0x38] sm:$0xf]
    %v360 = vld [vmem:[#allocation2 + $0x3c] sm:$0xf]
    %v377 = vunpack.c.l.b16 %v345
    %v378 = vunpack.c.l.b16 %v346
    %v379 = vunpack.c.l.b16 %v347
    %v380 = vunpack.c.l.b16 %v348
    %v381 = vunpack.c.l.b16 %v349
    %v382 = vunpack.c.l.b16 %v350
    %v383 = vunpack.c.l.b16 %v351
    %v384 = vunpack.c.l.b16 %v352
    %v385 = vunpack.c.l.b16 %v353
    %v386 = vunpack.c.l.b16 %v354
    %v387 = vunpack.c.l.b16 %v355
    %v388 = vunpack.c.l.b16 %v356
    %v389 = vunpack.c.l.b16 %v357
    %v390 = vunpack.c.l.b16 %v358
    %v391 = vunpack.c.l.b16 %v359
    %v392 = vunpack.c.l.b16 %v360
    %v393 = vpack.c.b16 %v378, %v377
    %v394 = vpack.c.b16 %v380, %v379
    %v395 = vpack.c.b16 %v382, %v381
    %v396 = vpack.c.b16 %v384, %v383
    %v397 = vpack.c.b16 %v386, %v385
    %v398 = vpack.c.b16 %v388, %v387
    %v399 = vpack.c.b16 %v390, %v389
    %v400 = vpack.c.b16 %v392, %v391
    %409 = vmatprep.subr.bf16.mxu0 0
    %410 = vmatpush1.bf16.msra.mxu0 %v400
    %411 = vmatprep.subr.bf16.mxu0 0
    %412 = vmatpush1.bf16.msra.mxu0 %v399
    %413 = vmatprep.subr.bf16.mxu0 0
    %414 = vmatpush1.bf16.msra.mxu0 %v398
    %415 = vmatprep.subr.bf16.mxu0 0
    %416 = vmatpush1.bf16.msra.mxu0 %v397
    %417 = vmatprep.subr.bf16.mxu0 0
    %418 = vmatpush1.bf16.msra.mxu0 %v396
    %419 = vmatprep.subr.bf16.mxu0 0
    %420 = vmatpush1.bf16.msra.mxu0 %v395
    %421 = vmatprep.subr.bf16.mxu0 0
    %422 = vmatpush1.bf16.msra.mxu0 %v394
    %423 = vmatprep.subr.bf16.mxu0 0
    %424 = vmatpush1.bf16.msra.mxu0 %v393
    %425 = vmatprep.subr.bf16.mxu0 0
    %426 = vmatpush2.bf16.msra.mxu0 0
    %427 = vmatprep.subr.bf16.mxu0 0
    %428 = vmatpush2.bf16.msra.mxu0 0
    %429 = vmatprep.subr.bf16.mxu0 0
    %430 = vmatpush2.bf16.msra.mxu0 0
    %431 = vmatprep.subr.bf16.mxu0 0
    %432 = vmatpush2.bf16.msra.mxu0 0
    %433 = vmatprep.subr.bf16.mxu0 0
    %434 = vmatpush2.bf16.msra.mxu0 0
    %435 = vmatprep.subr.bf16.mxu0 0
    %436 = vmatpush2.bf16.msra.mxu0 0
    %437 = vmatprep.subr.bf16.mxu0 0
    %438 = vmatpush2.bf16.msra.mxu0 0
    %439 = vmatprep.subr.bf16.mxu0 0
    %440 = vmatpush2.bf16.msra.mxu0 0
    %441 = vmatprep.mubr.bf16.mxu0 0
    %442 = vmatmul.mubr.bf16.gmra.mxu0 %v343
    %v443 = vpop.f32.mrf.mxu0
    %v444 = vadd.f32 0.0, %v443
    %v445 = vpop.f32.mrf.mxu0
    %v446 = vpop.f32.mrf.mxu0
    %v447 = vadd.f32 0.0, %v446
    %v448 = vpop.f32.mrf.mxu0
    %449 = vmatprep.mubr.bf16.mxu0 0
    %450 = vmatmul.mubr.bf16.gmra.mxu0 %v344
    %v451 = vpop.f32.mrf.mxu0
    %v452 = vadd.f32 0.0, %v451
    %v453 = vpop.f32.mrf.mxu0
    %v454 = vpop.f32.mrf.mxu0
    %v455 = vadd.f32 0.0, %v454
    %v456 = vpop.f32.mrf.mxu0
    %457 = vdwg.mxu0
    %v458 = vmax.f32 %v444, 1e-05
    %v459 = vmax.f32 %v447, 1e-05
    %v460 = vmax.f32 %v452, 1e-05
    %v461 = vmax.f32 %v455, 1e-05
    %v462 = vlog2.pop %v458
    %v463 = vmul.f32 %v462, 0.6931472
    %v464 = vlog2.pop %v459
    %v465 = vmul.f32 %v464, 0.6931472
    %v466 = vlog2.pop %v460
    %v467 = vmul.f32 %v466, 0.6931472
    %v468 = vlog2.pop %v461
    %v469 = vmul.f32 %v468, 0.6931472
    %470 = vst [vmem:[#allocation5] sm:$0xff] %v463
    %471 = vst [vmem:[#allocation5 + $0x8] sm:$0xff] %v465
    %472 = vst [vmem:[#allocation5 + $0x10] sm:$0xff] %v467
    %473 = vst [vmem:[#allocation5 + $0x18] sm:$0xff] %v469
    // Predicated region
    $region18: #{mel_spectrogram.1} parent=1 // pred_check
      _
    $region19: #{mel_spectrogram.1} parent=1 // pred_check_branch
      %475 = sbr.rel (0) target = $region21
    $region20: #{mel_spectrogram.1} parent=1 // pred_region
      %s477 = ssub.s32 512, 512
      %478 = vsyncadd [#allocation4], %s477
      %s479 = sshll.u32 [#allocation5], 4
      %s480 = int_to_ptr.vmem [resolvable:$true] %s479
      %485 = dma.vmem_to_hbm [thread:$0]  %s480, 512, %s3, [#allocation4], 128, 128, 8
    $region21: #{mel_spectrogram.1} parent=1 // pred_fallthru
      _
    // Predicated region
    $region22: #{mel_spectrogram.1} parent=1 // pred_check
      _
    $region23: #{mel_spectrogram.1} parent=1 // pred_check_branch
      %487 = sbr.rel (0) target = $region25
    $region24: #{mel_spectrogram.1} parent=1 // pred_region
      %488 = dma.done [#allocation4], 512
    $region25: #{mel_spectrogram.1} parent=1 // pred_fallthru
      _
    %489 = vsyncpa [#allocation3], 1
    %490 = vsyncpa [#allocation4], 1

</llo_original>
